<compile_context>
chip_gen: v7x
topology: tpu7x:2x2x1
jax: 0.10.0
libtpu: 0.0.40
codegen_flags: <defaults>
</compile_context>

<pallas_src>
import jax
import jax.numpy as jnp
from jax.experimental import pallas as pl
from jax.experimental.pallas import tpu as pltpu


def _bert_pooler_kernel(h_ref, m_ref, w_ref, b_ref, o_ref, sum_sc, den_sc):
    # h_ref: [TB, TS, H]  hidden-state tile (input dtype, streamed)
    # m_ref: [TB, TS]     attention-mask tile (streamed)
    # w_ref: [H, H]       dense weight, pre-transposed to [H_in, H_out] (resident)
    # b_ref: [1, H]       dense bias (resident)
    # o_ref: [TB, H]      output tile (revisited across the seq axis)
    # sum_sc: [TB, H] f32 running masked sum;  den_sc: [TB, 1] f32 token count
    s = pl.program_id(1)

    @pl.when(s == 0)
    def _init():
        sum_sc[...] = jnp.zeros_like(sum_sc)
        den_sc[...] = jnp.zeros_like(den_sc)

    h = h_ref[...]                                   # keep input dtype (no upcast)
    m = m_ref[...]
    masked = h * m.astype(h.dtype)[:, :, None]       # [TB, TS, H], input dtype
    # Sublane-axis reduction with f32 accumulation; stays in vregs (mem-bound).
    sum_sc[...] += jnp.sum(masked, axis=1, dtype=jnp.float32)            # [TB, H]
    den_sc[...] += jnp.sum(m, axis=1, keepdims=True, dtype=jnp.float32)  # [TB, 1]

    @pl.when(s == pl.num_programs(1) - 1)
    def _finalize():
        # (summed / denom) @ W == (summed @ W) / denom : scale the small [TB, H]
        # matmul *result* instead of the operand (one fewer [TB,H] multiply
        # before the MXU, and the scale fuses with the bias add).
        w = w_ref[...]
        if w.dtype == jnp.float32:
            lhs = sum_sc[...]
        else:
            # bf16 (or narrower) weights: feed the MXU matching-narrow operands,
            # accumulate in f32.
            lhs = sum_sc[...].astype(w.dtype)
        out = jnp.dot(lhs, w, preferred_element_type=jnp.float32)        # [TB, H]
        inv = pl.reciprocal(jnp.maximum(den_sc[...], 1e-9), approx=True)  # EUP
        out = out * inv + b_ref[...].astype(jnp.float32)
        o_ref[...] = jnp.tanh(out).astype(o_ref.dtype)


def _choose_tiles(B, S, H, itemsize, block_budget_bytes=4 * 1024 * 1024):
    """Pick (TB, TS) so the double-buffered hidden-state block fits comfortably
    inside scoped VMEM on every TPU generation (incl. v7x's 64 MiB)."""
    # Batch tile: 8 rows (sublane count) if it divides B, else the whole batch
    # (block dims equal to the full array dim are always legal).
    TB = 8 if (B > 8 and B % 8 == 0) else B
    # Sequence tile: full S if the [TB, S, H] block fits the budget, else the
    # largest lane-aligned (multiple of 128) divisor of S that fits.
    TS = S
    if TB * S * H * itemsize > block_budget_bytes:
        best = None
        cand = 128
        while cand <= S:
            if S % cand == 0 and TB * cand * H * itemsize <= block_budget_bytes:
                best = cand
            cand *= 2
        if best is not None:
            TS = best
    return TB, TS


@jax.jit
def bert_pooler(hidden_states, attention_mask, weight_t, bias):
    """hidden_states: [B, S, H]; attention_mask: [B, S] (1.0 keep / 0.0 pad);
    weight_t: [H_in, H_out] (nn.Linear weight transposed ONCE at init);
    bias: [H_out]."""
    B, S, H = hidden_states.shape
    TB, TS = _choose_tiles(B, S, H, hidden_states.dtype.itemsize)
    nb, ns = B // TB, S // TS
    b2 = bias.reshape(1, H)

    grid_spec = pltpu.PrefetchScalarGridSpec(
        num_scalar_prefetch=0,
        grid=(nb, ns),
        in_specs=[
            pl.BlockSpec((TB, TS, H), lambda b, s: (b, s, 0)),   # streamed h tiles
            pl.BlockSpec((TB, TS), lambda b, s: (b, s)),         # streamed mask tiles
            pl.BlockSpec((H, H), lambda b, s: (0, 0)),           # weight: resident
            pl.BlockSpec((1, H), lambda b, s: (0, 0)),           # bias: resident
        ],
        out_specs=pl.BlockSpec((TB, H), lambda b, s: (b, 0)),    # revisited over s
        scratch_shapes=[
            pltpu.VMEM((TB, H), jnp.float32),                    # masked-sum accum
            pltpu.VMEM((TB, 1), jnp.float32),                    # token-count accum
        ],
    )

    return pl.pallas_call(
        _bert_pooler_kernel,
        out_shape=jax.ShapeDtypeStruct((B, H), hidden_states.dtype),
        grid_spec=grid_spec,
        compiler_params=pltpu.CompilerParams(
            dimension_semantics=("parallel", "arbitrary"),
            vmem_limit_bytes=32 * 1024 * 1024,
        ),
    )(hidden_states, attention_mask, weight_t, b2)


if __name__ == "__main__":
    B, S, H = 2, 8, 32  # small shapes consistent with the module

    key = jax.random.PRNGKey(0)
    k_h, k_w, k_b = jax.random.split(key, 3)

    hidden_states = jax.random.normal(k_h, (B, S, H), dtype=jnp.float32)
    # attention mask: first sample keeps all tokens, second sample pads the last 3
    attention_mask = jnp.concatenate(
        [jnp.ones((1, S), jnp.float32),
         jnp.concatenate([jnp.ones((1, S - 3), jnp.float32),
                          jnp.zeros((1, 3), jnp.float32)], axis=1)],
        axis=0,
    )

    # Deterministic nn.Linear(H, H) parameters (PyTorch layout: weight [out, in]).
    bound = 1.0 / (H ** 0.5)
    weight = jax.random.uniform(k_w, (H, H), jnp.float32, -bound, bound)
    bias = jax.random.uniform(k_b, (H,), jnp.float32, -bound, bound)

    # Pre-transpose the nn.Linear weight ONCE (cached parameter prep, not per call).
    weight_t = weight.T

    out = bert_pooler(hidden_states, attention_mask, weight_t, bias)
    out = jax.block_until_ready(out)

    # Reference check in plain JAX (masked mean pooling -> dense -> tanh).
    mask = attention_mask[:, :, None]
    pooled_ref = (hidden_states * mask).sum(1) / jnp.maximum(mask.sum(1), 1e-9)
    ref = jnp.tanh(pooled_ref @ weight.T + bias)

    assert out.shape == (B, H)
    # Tolerance covers the EUP approximate reciprocal used for 1/denom.
    assert jnp.allclose(out, ref, atol=2e-3, rtol=2e-3), \
        float(jnp.max(jnp.abs(out - ref)))

    print("KERNEL_OK")
</pallas_src>

<mosaic_0001>
module attributes {stable_mosaic.version = 11 : i64} {
  func.func @_bert_pooler_kernel(%arg0: i32, %arg1: i32, %arg2: memref<2x8x32xf32, #tpu.memory_space<vmem>>, %arg3: memref<2x8xf32, #tpu.memory_space<vmem>>, %arg4: memref<32x32xf32, #tpu.memory_space<vmem>>, %arg5: memref<1x32xf32, #tpu.memory_space<vmem>>, %arg6: memref<2x32xf32, #tpu.memory_space<vmem>>, %arg7: memref<2x32xf32, #tpu.memory_space<vmem>>, %arg8: memref<2x1xf32, #tpu.memory_space<vmem>>) attributes {dimension_semantics = [#tpu.dimension_semantics<parallel>, #tpu.dimension_semantics<arbitrary>], iteration_bounds = array<i64: 1, 1>, scalar_prefetch = 0 : i64, scratch_operands = 2 : i64, tpu.core_type = #tpu.core_type<tc>, window_params = [{transform_indices = @transform_0, window_bounds = array<i64: 2, 8, 32>}, {transform_indices = @transform_1, window_bounds = array<i64: 2, 8>}, {pipeline_mode = #tpu.pipeline_mode<synchronous>, transform_indices = @transform_2, window_bounds = array<i64: 32, 32>}, {pipeline_mode = #tpu.pipeline_mode<synchronous>, transform_indices = @transform_3, window_bounds = array<i64: 1, 32>}, {transform_indices = @transform_4, window_bounds = array<i64: 2, 32>}]} {
    %c0_i32 = arith.constant 0 : i32
    %0 = arith.cmpi eq, %arg1, %c0_i32 : i32
    %1 = arith.extui %0 : i1 to i32
    %c0_i32_0 = arith.constant 0 : i32
    %2 = arith.cmpi ne, %1, %c0_i32_0 : i32
    scf.if %2 {
      %cst_16 = arith.constant 0.000000e+00 : f32
      %20 = vector.broadcast %cst_16 : f32 to vector<2x32xf32>
      %c0_17 = arith.constant 0 : index
      %c0_18 = arith.constant 0 : index
      %21 = vector.load %arg7[%c0_17, %c0_18] : memref<2x32xf32, #tpu.memory_space<vmem>>, vector<2x32xf32>
      tpu.vector_store %arg7[%c0_17, %c0_18], %20 {strides = array<i32>} : memref<2x32xf32, #tpu.memory_space<vmem>>, vector<2x32xf32>,
      %cst_19 = arith.constant 0.000000e+00 : f32
      %22 = vector.broadcast %cst_19 : f32 to vector<2x1xf32>
      %c0_20 = arith.constant 0 : index
      %c0_21 = arith.constant 0 : index
      %23 = vector.load %arg8[%c0_20, %c0_21] : memref<2x1xf32, #tpu.memory_space<vmem>>, vector<2x1xf32>
      tpu.vector_store %arg8[%c0_20, %c0_21], %22 {strides = array<i32>} : memref<2x1xf32, #tpu.memory_space<vmem>>, vector<2x1xf32>,
    } else {
    }
    %c0 = arith.constant 0 : index
    %c0_1 = arith.constant 0 : index
    %c0_2 = arith.constant 0 : index
    %3 = vector.load %arg2[%c0, %c0_1, %c0_2] : memref<2x8x32xf32, #tpu.memory_space<vmem>>, vector<2x8x32xf32>
    %c0_3 = arith.constant 0 : index
    %c0_4 = arith.constant 0 : index
    %4 = vector.load %arg3[%c0_3, %c0_4] : memref<2x8xf32, #tpu.memory_space<vmem>>, vector<2x8xf32>
    %5 = vector.shape_cast %4 : vector<2x8xf32> to vector<2x8x1xf32>
    %6 = vector.broadcast %5 : vector<2x8x1xf32> to vector<2x8x32xf32>
    %7 = arith.mulf %3, %6 : vector<2x8x32xf32>
    %c0_5 = arith.constant 0 : index
    %c0_6 = arith.constant 0 : index
    %8 = vector.load %arg7[%c0_5, %c0_6] : memref<2x32xf32, #tpu.memory_space<vmem>>, vector<2x32xf32>
    %cst = arith.constant dense<0.000000e+00> : vector<2x32xf32>
    %9 = vector.multi_reduction <add>, %7, %cst [1] : vector<2x8x32xf32> to vector<2x32xf32>
    %10 = arith.addf %8, %9 : vector<2x32xf32>
    %c0_7 = arith.constant 0 : index
    %c0_8 = arith.constant 0 : index
    %11 = vector.load %arg7[%c0_7, %c0_8] : memref<2x32xf32, #tpu.memory_space<vmem>>, vector<2x32xf32>
    tpu.vector_store %arg7[%c0_7, %c0_8], %10 {strides = array<i32>} : memref<2x32xf32, #tpu.memory_space<vmem>>, vector<2x32xf32>,
    %c0_9 = arith.constant 0 : index
    %c0_10 = arith.constant 0 : index
    %12 = vector.load %arg8[%c0_9, %c0_10] : memref<2x1xf32, #tpu.memory_space<vmem>>, vector<2x1xf32>
    %cst_11 = arith.constant dense<0.000000e+00> : vector<2xf32>
    %13 = vector.multi_reduction <add>, %4, %cst_11 [1] : vector<2x8xf32> to vector<2xf32>
    %14 = vector.shape_cast %13 : vector<2xf32> to vector<2x1xf32>
    %15 = arith.addf %12, %14 : vector<2x1xf32>
    %c0_12 = arith.constant 0 : index
    %c0_13 = arith.constant 0 : index
    %16 = vector.load %arg8[%c0_12, %c0_13] : memref<2x1xf32, #tpu.memory_space<vmem>>, vector<2x1xf32>
    tpu.vector_store %arg8[%c0_12, %c0_13], %15 {strides = array<i32>} : memref<2x1xf32, #tpu.memory_space<vmem>>, vector<2x1xf32>,
    %c0_i32_14 = arith.constant 0 : i32
    %17 = arith.cmpi eq, %arg1, %c0_i32_14 : i32
    %18 = arith.extui %17 : i1 to i32
    %c0_i32_15 = arith.constant 0 : i32
    %19 = arith.cmpi ne, %18, %c0_i32_15 : i32
    scf.if %19 {
      %c0_16 = arith.constant 0 : index
      %c0_17 = arith.constant 0 : index
      %20 = vector.load %arg4[%c0_16, %c0_17] : memref<32x32xf32, #tpu.memory_space<vmem>>, vector<32x32xf32>
      %c0_18 = arith.constant 0 : index
      %c0_19 = arith.constant 0 : index
      %21 = vector.load %arg7[%c0_18, %c0_19] : memref<2x32xf32, #tpu.memory_space<vmem>>, vector<2x32xf32>
      %cst_20 = arith.constant dense<0.000000e+00> : vector<2x32xf32>
      %22 = tpu.matmul %21, %20, %cst_20 {dimension_numbers = #tpu.dot_dimension_numbers<[1], [0], [0], [1], [0, 0, 1, 1], [], []>} : vector<2x32xf32>, vector<32x32xf32>, vector<2x32xf32> -> vector<2x32xf32>
      %c0_21 = arith.constant 0 : index
      %c0_22 = arith.constant 0 : index
      %23 = vector.load %arg8[%c0_21, %c0_22] : memref<2x1xf32, #tpu.memory_space<vmem>>, vector<2x1xf32>
      %cst_23 = arith.constant 9.99999971E-10 : f32
      %24 = vector.broadcast %cst_23 : f32 to vector<2x1xf32>
      %25 = arith.maximumf %23, %24 : vector<2x1xf32>
      %26 = tpu.reciprocal %25 {approx = true} : vector<2x1xf32> -> vector<2x1xf32>
      %27 = vector.broadcast %26 : vector<2x1xf32> to vector<2x32xf32>
      %28 = arith.mulf %22, %27 : vector<2x32xf32>
      %c0_24 = arith.constant 0 : index
      %c0_25 = arith.constant 0 : index
      %29 = vector.load %arg5[%c0_24, %c0_25] : memref<1x32xf32, #tpu.memory_space<vmem>>, vector<1x32xf32>
      %30 = vector.broadcast %29 : vector<1x32xf32> to vector<2x32xf32>
      %31 = arith.addf %28, %30 : vector<2x32xf32>
      %32 = math.tanh %31 : vector<2x32xf32>
      %c0_26 = arith.constant 0 : index
      %c0_27 = arith.constant 0 : index
      %33 = vector.load %arg6[%c0_26, %c0_27] : memref<2x32xf32, #tpu.memory_space<vmem>>, vector<2x32xf32>
      tpu.vector_store %arg6[%c0_26, %c0_27], %32 {strides = array<i32>} : memref<2x32xf32, #tpu.memory_space<vmem>>, vector<2x32xf32>,
    } else {
    }
    return
  }
  func.func @transform_0(%arg0: i32, %arg1: i32) -> (i32, i32, i32) {
    %c0_i32 = arith.constant 0 : i32
    %c0_i32_0 = arith.constant 0 : i32
    return %arg0, %arg1, %c0_i32 : i32, i32, i32
  }
  func.func @transform_1(%arg0: i32, %arg1: i32) -> (i32, i32) {
    %c0_i32 = arith.constant 0 : i32
    return %arg0, %arg1 : i32, i32
  }
  func.func @transform_2(%arg0: i32, %arg1: i32) -> (i32, i32) {
    %c0_i32 = arith.constant 0 : i32
    %c0_i32_0 = arith.constant 0 : i32
    %c0_i32_1 = arith.constant 0 : i32
    return %c0_i32, %c0_i32_0 : i32, i32
  }
  func.func @transform_3(%arg0: i32, %arg1: i32) -> (i32, i32) {
    %c0_i32 = arith.constant 0 : i32
    %c0_i32_0 = arith.constant 0 : i32
    %c0_i32_1 = arith.constant 0 : i32
    return %c0_i32, %c0_i32_0 : i32, i32
  }
  func.func @transform_4(%arg0: i32, %arg1: i32) -> (i32, i32) {
    %c0_i32 = arith.constant 0 : i32
    %c0_i32_0 = arith.constant 0 : i32
    return %arg0, %c0_i32 : i32, i32
  }
}

</mosaic_0001>

<llo_original>
// kernel: bert_pooler.1
$region0: #{bert_pooler.1}
  #allocation0 [shape = 'u32[]', space=smem, size = 0x4, offset = 0x4, fixed_abs, tag = 'smem constant byte address 0x4 - core index']
  #allocation1 [shape = 'u32[144,128]{1,0:T(1,128)}', space=vmem, size = 0x12000, scoped, tag = 'internal scratch']
  #allocation2 [shape = 'f32[2,32]{1,0:T(2,128)}', space=vmem, size = 0x400, scoped, tag = 'scratch operand']
  #allocation3 [shape = 'f32[2,1]{1,0:T(2,128)}', space=vmem, size = 0x400, scoped, tag = 'scratch operand']
  %s0 = inlined_call_operand.hbm [shape: f32[2,8,32], index: 0, kind: input, shape index: {}]
  %s1 = inlined_call_operand.vmem [shape: f32[2,8], index: 1, kind: input, shape index: {}]
  %s2 = inlined_call_operand.hbm [shape: f32[32,32], index: 2, kind: input, shape index: {}]
  %s3 = inlined_call_operand.vmem [shape: f32[1,32], index: 3, kind: input, shape index: {}]
  %s4 = inlined_call_operand.hbm [shape: f32[2,32], index: 4, kind: output, shape index: {}]
  %s5 = sld [smem:[#allocation0]]
  $region42: #{bert_pooler.1} parent=0
    _
  %s7 = ssub.s32 1, %s5
  %s8 = scalar_select 0, %s7, %s5
  $region1: #{bert_pooler.1} parent=0
    #allocation4 [shape = 'u8[8192]{0}', space=vmem, size = 0x2000, scoped, tag = 'input window, operand 0, single buffered']
    #allocation5 [shape = 's32[1]{0}', space=sflag, size = 0x4, scoped, tag = 'scoped memory for bert_pooler.1']
    #allocation6 [shape = 's32[1]{0}', space=sflag, size = 0x4, scoped, tag = 'scoped memory for bert_pooler.1']
    #allocation7 [shape = 'u8[16384]{0}', space=vmem, size = 0x4000, scoped, tag = 'input window, operand 2, single buffered']
    #allocation8 [shape = 's32[1]{0}', space=sflag, size = 0x4, scoped, tag = 'scoped memory for bert_pooler.1']
    #allocation9 [shape = 'u8[1024]{0}', space=vmem, size = 0x400, scoped, tag = 'output window, operand 0, single buffered']
    %9 = vsyncpa [#allocation5], 0
    %10 = vsyncpa [#allocation8], 0
    %11 = vsyncpa [#allocation6], 0
    // Predicated region
    $region2: #{bert_pooler.1} parent=1 // pred_check
      _
    $region3: #{bert_pooler.1} parent=1 // pred_check_branch
      %13 = sbr.rel (0) target = $region5
    $region4: #{bert_pooler.1} parent=1 // pred_region
      %s15 = ssub.s32 256, 256
      %16 = vsyncadd [#allocation5], %s15
      %s17 = sshll.u32 [#allocation4], 4
      %s18 = int_to_ptr.vmem [resolvable:$true] %s17
      %23 = dma.hbm_to_vmem [thread:$0]  %s0, 256, %s18, [#allocation5], 128, 128, 8
    $region5: #{bert_pooler.1} parent=1 // pred_fallthru
      _
    // Predicated region
    $region6: #{bert_pooler.1} parent=1 // pred_check
      _
    $region7: #{bert_pooler.1} parent=1 // pred_check_branch
      %25 = sbr.rel (0) target = $region9
    $region8: #{bert_pooler.1} parent=1 // pred_region
      _
    $region9: #{bert_pooler.1} parent=1 // pred_fallthru
      _
    // Predicated region
    $region10: #{bert_pooler.1} parent=1 // pred_check
      _
    $region11: #{bert_pooler.1} parent=1 // pred_check_branch
      %27 = sbr.rel (0) target = $region13
    $region12: #{bert_pooler.1} parent=1 // pred_region
      %s29 = ssub.s32 512, 512
      %30 = vsyncadd [#allocation8], %s29
      %s31 = sshll.u32 [#allocation7], 4
      %s32 = int_to_ptr.vmem [resolvable:$true] %s31
      %37 = dma.hbm_to_vmem [thread:$0]  %s2, 512, %s32, [#allocation8], 128, 128, 8
    $region13: #{bert_pooler.1} parent=1 // pred_fallthru
      _
    // Predicated region
    $region14: #{bert_pooler.1} parent=1 // pred_check
      _
    $region15: #{bert_pooler.1} parent=1 // pred_check_branch
      %39 = sbr.rel (0) target = $region17
    $region16: #{bert_pooler.1} parent=1 // pred_region
      _
    $region17: #{bert_pooler.1} parent=1 // pred_fallthru
      _
    // Predicated region
    $region18: #{bert_pooler.1} parent=1 // pred_check
      _
    $region19: #{bert_pooler.1} parent=1 // pred_check_branch
      %41 = sbr.rel (0) target = $region21
    $region20: #{bert_pooler.1} parent=1 // pred_region
      %42 = dma.done [#allocation5], 256
    $region21: #{bert_pooler.1} parent=1 // pred_fallthru
      _
    // Predicated region
    $region22: #{bert_pooler.1} parent=1 // pred_check
      _
    $region23: #{bert_pooler.1} parent=1 // pred_check_branch
      %44 = sbr.rel (0) target = $region25
    $region24: #{bert_pooler.1} parent=1 // pred_region
      %45 = dma.done [#allocation8], 512
    $region25: #{bert_pooler.1} parent=1 // pred_fallthru
      _
    %p46 = scmp.eq.s32.totalorder 0, 0
    // Predicated region
    $region26: #{bert_pooler.1} parent=1 // pred_check
      %p47 = pneg %p46
    $region27: #{bert_pooler.1} parent=1 // pred_check_branch
      %49 = sbr.rel (%p47) target = $region29
    $region28: #{bert_pooler.1} parent=1 // pred_region
      %vm50 = vcmask 254976
      %51 = vst.msk [vmem:[#allocation2] sm:$0x3] %vm50, 0.0
      %vm52 = vcmask 1024
      %53 = vst.msk [vmem:[#allocation3] sm:$0x3] %vm52, 0.0
    $region29: #{bert_pooler.1} parent=1 // pred_fallthru
      _
    %v54 = vld [vmem:[#allocation4] sm:$0xff]
    %v55 = vld [vmem:[#allocation4 + $0x8] sm:$0xff]
    %v56 = vld [vmem:[%s1] sm:$0x3]
    %v57 = vlaneseq
    %v58 = vshrl.u32 %v57, 7
    %v59 = vsub.s32 0, %v58
    %v60 = vrot.slane %v56, %v59
    %62 = vbcast.lane.b32.xlu0 %v60, 256
    %v63 = vpop.permute.xlu0 %62
    %v64 = vlaneseq
    %v65 = vshrl.u32 %v64, 7
    %v66 = vsub.s32 1, %v65
    %v67 = vrot.slane %v56, %v66
    %69 = vbcast.lane.b32.xlu0 %v67, 256
    %v70 = vpop.permute.xlu0 %69
    %v71 = vmul.f32 %v54, %v63
    %v72 = vmul.f32 %v55, %v70
    %v73 = vld [vmem:[#allocation2] sm:$0x3]
    %vm74 = vcmask 261120
    %v75 = vsel %vm74, %v71, 0.0
    %v76 = vrot.slane %v75, 4
    %v77 = vadd.f32 %v75, %v76
    %v78 = vrot.slane %v77, 2
    %v79 = vadd.f32 %v77, %v78
    %v80 = vrot.slane %v79, 1
    %v81 = vadd.f32 %v79, %v80
    %v82 = vsel %vm74, %v72, 0.0
    %v83 = vrot.slane %v82, 4
    %v84 = vadd.f32 %v82, %v83
    %v85 = vrot.slane %v84, 2
    %v86 = vadd.f32 %v84, %v85
    %v87 = vrot.slane %v86, 1
    %v88 = vadd.f32 %v86, %v87
    %vm91 = vcmask 1041409
    %v92 = vsel %vm91, %v88, %v81
    %v94 = vadd.f32 %v73, %v92
    %vm95 = vcmask 254976
    %96 = vst.msk [vmem:[#allocation2] sm:$0x3] %vm95, %v94
    %v97 = vld [vmem:[#allocation3] sm:$0x3]
    %vm98 = vcmask 58368
    %v99 = vsel %vm98, %v56, 0.0
    %100 = vadd.xlane.f32.xlu0 %v99
    %v101 = vpop.xlane.xlu0 %100
    %v102 = vadd.f32 %v97, %v101
    %vm103 = vcmask 1024
    %104 = vst.msk [vmem:[#allocation3] sm:$0x3] %vm103, %v102
    // Predicated region
    $region30: #{bert_pooler.1} parent=1 // pred_check
      %p105 = pneg %p46
    $region31: #{bert_pooler.1} parent=1 // pred_check_branch
      %107 = sbr.rel (%p105) target = $region33
    $region32: #{bert_pooler.1} parent=1 // pred_region
      %v108 = vld [vmem:[#allocation7] sm:$0xff]
      %v109 = vld [vmem:[#allocation7 + $0x8] sm:$0xff]
      %v110 = vld [vmem:[#allocation7 + $0x10] sm:$0xff]
      %v111 = vld [vmem:[#allocation7 + $0x18] sm:$0xff]
      %v112 = vld [vmem:[#allocation2] sm:$0x3]
      %v114 = vsel %vm74, %v112, 0
      %116 = vmatprep.subr.mxu0 0.0
      %117 = vmatpush1.msra.mxu0 %v108
      %118 = vmatprep.subr.mxu0 0.0
      %119 = vmatpush1.msra.mxu0 %v109
      %120 = vmatprep.subr.mxu0 0.0
      %121 = vmatpush1.msra.mxu0 %v110
      %122 = vmatprep.subr.mxu0 0.0
      %123 = vmatpush1.msra.mxu0 %v111
      %124 = vmatprep.subr.mxu0 0.0
      %125 = vmatpush1.msra.mxu0 0.0
      %126 = vmatprep.subr.mxu0 0.0
      %127 = vmatpush1.msra.mxu0 0.0
      %128 = vmatprep.subr.mxu0 0.0
      %129 = vmatpush1.msra.mxu0 0.0
      %130 = vmatprep.subr.mxu0 0.0
      %131 = vmatpush1.msra.mxu0 0.0
      %132 = vmatprep.subr.mxu0 0.0
      %133 = vmatpush1.msra.mxu0 0.0
      %134 = vmatprep.subr.mxu0 0.0
      %135 = vmatpush1.msra.mxu0 0.0
      %136 = vmatprep.subr.mxu0 0.0
      %137 = vmatpush1.msra.mxu0 0.0
      %138 = vmatprep.subr.mxu0 0.0
      %139 = vmatpush1.msra.mxu0 0.0
      %140 = vmatprep.subr.mxu0 0.0
      %141 = vmatpush1.msra.mxu0 0.0
      %142 = vmatprep.subr.mxu0 0.0
      %143 = vmatpush1.msra.mxu0 0.0
      %144 = vmatprep.subr.mxu0 0.0
      %145 = vmatpush1.msra.mxu0 0.0
      %146 = vmatprep.subr.mxu0 0.0
      %147 = vmatpush1.msra.mxu0 0.0
      %148 = vmatprep.subr.mxu0 0.0
      %149 = vmatpush1.msra.mxu0 0.0
      %150 = vmatprep.subr.mxu0 0.0
      %151 = vmatpush1.msra.mxu0 0.0
      %152 = vmatprep.subr.mxu0 0.0
      %153 = vmatpush1.msra.mxu0 0.0
      %154 = vmatprep.subr.mxu0 0.0
      %155 = vmatpush1.msra.mxu0 0.0
      %156 = vmatprep.subr.mxu0 0.0
      %157 = vmatpush1.msra.mxu0 0.0
      %158 = vmatprep.subr.mxu0 0.0
      %159 = vmatpush1.msra.mxu0 0.0
      %160 = vmatprep.subr.mxu0 0.0
      %161 = vmatpush1.msra.mxu0 0.0
      %162 = vmatprep.subr.mxu0 0.0
      %163 = vmatpush1.msra.mxu0 0.0
      %164 = vmatprep.subr.mxu0 0.0
      %165 = vmatpush1.msra.mxu0 0.0
      %166 = vmatprep.subr.mxu0 0.0
      %167 = vmatpush1.msra.mxu0 0.0
      %168 = vmatprep.subr.mxu0 0.0
      %169 = vmatpush1.msra.mxu0 0.0
      %170 = vmatprep.subr.mxu0 0.0
      %171 = vmatpush1.msra.mxu0 0.0
      %172 = vmatprep.subr.mxu0 0.0
      %173 = vmatpush1.msra.mxu0 0.0
      %174 = vmatprep.subr.mxu0 0.0
      %175 = vmatpush1.msra.mxu0 0.0
      %176 = vmatprep.subr.mxu0 0.0
      %177 = vmatpush1.msra.mxu0 0.0
      %178 = vmatprep.subr.mxu0 0.0
      %179 = vmatpush1.msra.mxu0 0.0
      %180 = vmatprep.mubr.f32.mxu0 0.0
      %181 = vmatmul.mubr.f32.gmra.mrb[0].mxu0 %v114
      %v182 = vpop.f32.mrb[0].mxu0
      %v183 = vadd.f32 0.0, %v182
      %v184 = vpop.f32.mrb[0].mxu0
      %185 = vdwg.mxu0
      %v186 = vld [vmem:[#allocation3] sm:$0x3]
      %v187 = vmax.f32 %v186, 1e-09
      %v188 = vrcp.pop %v187
      %190 = vset.pattern.permute.xlu0 0
      %191 = vperm.xlu0 %190, %v188
      %v192 = vpop.permute.xlu0 %191
      %v194 = vmul.f32 %v183, %v192
      %v195 = vld [vmem:[%s3] sm:$0x1]
      %v197 = vlaneseq
      %v198 = vshrl.u32 %v197, 7
      %v199 = vsub.s32 0, %v198
      %v200 = vrot.slane %v195, %v199
      %v202 = vadd.f32 %v194, %v200
      %v203 = vtanh.pop %v202
      %204 = vst.msk [vmem:[#allocation9] sm:$0x3] %vm95, %v203
    $region33: #{bert_pooler.1} parent=1 // pred_fallthru
      _
    // Predicated region
    $region34: #{bert_pooler.1} parent=1 // pred_check
      _
    $region35: #{bert_pooler.1} parent=1 // pred_check_branch
      %206 = sbr.rel (0) target = $region37
    $region36: #{bert_pooler.1} parent=1 // pred_region
      %s208 = ssub.s32 32, 32
      %209 = vsyncadd [#allocation6], %s208
      %s211 = sshll.u32 [#allocation9], 4
      %s212 = int_to_ptr.vmem [resolvable:$true] %s211
      %214 = dma.vmem_to_hbm [thread:$0]  %s212, 32, %s4, [#allocation6]
    $region37: #{bert_pooler.1} parent=1 // pred_fallthru
      _
    // Predicated region
    $region38: #{bert_pooler.1} parent=1 // pred_check
      _
    $region39: #{bert_pooler.1} parent=1 // pred_check_branch
      %216 = sbr.rel (0) target = $region41
    $region40: #{bert_pooler.1} parent=1 // pred_region
      %217 = dma.done [#allocation6], 32
    $region41: #{bert_pooler.1} parent=1 // pred_fallthru
      _
    %218 = vsyncpa [#allocation5], 1
    %219 = vsyncpa [#allocation8], 1
    %220 = vsyncpa [#allocation6], 1

</llo_original>
